<compile_context>
chip_gen: v7x
topology: tpu7x:2x2x1
jax: 0.10.0
libtpu: 0.0.40
codegen_flags: <defaults>
</compile_context>

<pallas_src>
import math
import functools

import jax
import jax.numpy as jnp
from jax import lax
from jax.experimental import pallas as pl
from jax.experimental.pallas import tpu as pltpu


def _round_up(a, b):
    return (a + b - 1) // b * b


def cosine_linear_kernel(x_ref, w_ref, sx_ref, sw_ref, o_ref, acc_ref):
    """One (tm, tn) output tile, accumulated over the K grid axis."""
    k = pl.program_id(2)

    @pl.when(k == 0)
    def _():
        acc_ref[...] = jnp.zeros_like(acc_ref)

    # Contract feature dim of both operands directly (no transpose copy);
    # native-dtype operands, f32 MXU accumulation.
    acc_ref[...] += lax.dot_general(
        x_ref[...], w_ref[...],
        dimension_numbers=(((1,), (1,)), ((), ())),
        preferred_element_type=jnp.float32,
    )

    @pl.when(k == pl.num_programs(2) - 1)
    def _():
        # Epilogue: sigma and the reciprocal row norms in one fused scale.
        #   sx_ref: (tm, 1) = sigma / max(||x_i||, eps)
        #   sw_ref: (1, tn) = 1 / max(||w_j||, eps)
        o_ref[...] = (acc_ref[...] * sx_ref[...] * sw_ref[...]).astype(o_ref.dtype)


@functools.partial(jax.jit, static_argnames=("tm_max", "tn_max", "tk_max"))
def cosine_linear(x, weight, sigma, *, tm_max=256, tn_max=256, tk_max=512):
    """x: (B, D), weight: (O, D), sigma: scalar.  Returns (B, O)."""
    B, D = x.shape
    O, D2 = weight.shape
    assert D == D2

    # ---- tile sizes (8,128)-aligned; clipped so tiny problems stay tiny ----
    tm = min(tm_max, _round_up(B, 8))
    tn = min(tn_max, _round_up(O, 128))
    tk = min(tk_max, _round_up(D, 128))
    Mp, Np, Kp = _round_up(B, tm), _round_up(O, tn), _round_up(D, tk)

    # ---- precompute epilogue scales (reciprocal row norms, sigma folded in) ----
    eps = jnp.float32(1e-12)
    x32 = x.astype(jnp.float32)
    w32 = weight.astype(jnp.float32)
    inv_x = lax.rsqrt(jnp.maximum(jnp.sum(x32 * x32, axis=1), eps * eps))  # (B,)
    inv_w = lax.rsqrt(jnp.maximum(jnp.sum(w32 * w32, axis=1), eps * eps))  # (O,)
    scale_x = (jnp.asarray(sigma, jnp.float32).reshape(()) * inv_x).reshape(B, 1)
    scale_w = inv_w.reshape(1, O)

    # ---- zero-pad to tile multiples (zeros contribute nothing) ----
    xp = jnp.pad(x, ((0, Mp - B), (0, Kp - D)))
    wp = jnp.pad(weight, ((0, Np - O), (0, Kp - D)))
    sxp = jnp.pad(scale_x, ((0, Mp - B), (0, 0)))
    swp = jnp.pad(scale_w, ((0, 0), (0, Np - O)))

    grid = (Mp // tm, Np // tn, Kp // tk)

    out_p = pl.pallas_call(
        cosine_linear_kernel,
        out_shape=jax.ShapeDtypeStruct((Mp, Np), x.dtype),
        grid_spec=pltpu.PrefetchScalarGridSpec(
            num_scalar_prefetch=0,
            grid=grid,
            in_specs=[
                pl.BlockSpec((tm, tk), lambda i, j, k: (i, k)),  # x tile
                pl.BlockSpec((tn, tk), lambda i, j, k: (j, k)),  # w tile
                pl.BlockSpec((tm, 1), lambda i, j, k: (i, 0)),   # x scale
                pl.BlockSpec((1, tn), lambda i, j, k: (0, j)),   # w scale
            ],
            out_specs=pl.BlockSpec((tm, tn), lambda i, j, k: (i, j)),
            scratch_shapes=[pltpu.VMEM((tm, tn), jnp.float32)],
        ),
        compiler_params=pltpu.CompilerParams(
            dimension_semantics=("parallel", "parallel", "arbitrary"),
        ),
        cost_estimate=pl.CostEstimate(
            flops=2 * Mp * Np * Kp,
            transcendentals=0,
            bytes_accessed=(xp.size * xp.dtype.itemsize
                            + wp.size * wp.dtype.itemsize
                            + Mp * Np * x.dtype.itemsize),
        ),
    )(xp, wp, sxp, swp)

    return out_p[:B, :O]


def reference(x, weight, sigma):
    eps = 1e-12
    xn = x / jnp.maximum(jnp.linalg.norm(x, axis=1, keepdims=True), eps)
    wn = weight / jnp.maximum(jnp.linalg.norm(weight, axis=1, keepdims=True), eps)
    return sigma * (xn @ wn.T)


if __name__ == "__main__":
    key = jax.random.PRNGKey(0)
    kx, kw, kx2, kw2 = jax.random.split(key, 4)

    # --- case 1: small shapes matching the module (single-tile grid) ---
    B, in_features, out_features = 8, 32, 16
    stdv = 1.0 / math.sqrt(in_features)          # mirrors reset_parameters()
    weight = jax.random.uniform(kw, (out_features, in_features),
                                dtype=jnp.float32, minval=-stdv, maxval=stdv)
    sigma = jnp.float32(1.0)
    x = jax.random.normal(kx, (B, in_features), dtype=jnp.float32)

    out = jax.block_until_ready(cosine_linear(x, weight, sigma))
    ref = reference(x, weight, sigma)
    assert out.shape == (B, out_features)
    assert jnp.allclose(out, ref, atol=1e-5, rtol=1e-5)

    # --- case 2: small shapes but multi-tile grid (exercises K accumulation,
    #             padding, and the pl.when init/finalize paths) ---
    B2, D2, O2 = 16, 384, 272
    stdv2 = 1.0 / math.sqrt(D2)
    weight2 = jax.random.uniform(kw2, (O2, D2), dtype=jnp.float32,
                                 minval=-stdv2, maxval=stdv2)
    sigma2 = jnp.float32(1.5)
    x2 = jax.random.normal(kx2, (B2, D2), dtype=jnp.float32)

    out2 = jax.block_until_ready(
        cosine_linear(x2, weight2, sigma2, tm_max=8, tn_max=128, tk_max=128))
    ref2 = reference(x2, weight2, sigma2)
    assert out2.shape == (B2, O2)
    assert jnp.allclose(out2, ref2, atol=1e-5, rtol=1e-5)

    print("KERNEL_OK")
</pallas_src>

<mosaic_0001>
module attributes {stable_mosaic.version = 11 : i64} {
  func.func @cosine_linear_kernel(%arg0: i32, %arg1: i32, %arg2: i32, %arg3: memref<8x128xf32, #tpu.memory_space<vmem>>, %arg4: memref<128x128xf32, #tpu.memory_space<vmem>>, %arg5: memref<8x1xf32, #tpu.memory_space<vmem>>, %arg6: memref<1x128xf32, #tpu.memory_space<vmem>>, %arg7: memref<8x128xf32, #tpu.memory_space<vmem>>, %arg8: memref<8x128xf32, #tpu.memory_space<vmem>>) attributes {dimension_semantics = [#tpu.dimension_semantics<parallel>, #tpu.dimension_semantics<parallel>, #tpu.dimension_semantics<arbitrary>], iteration_bounds = array<i64: 1, 1, 1>, scalar_prefetch = 0 : i64, scratch_operands = 1 : i64, tpu.core_type = #tpu.core_type<tc>, window_params = [{transform_indices = @transform_0, window_bounds = array<i64: 8, 128>}, {transform_indices = @transform_1, window_bounds = array<i64: 128, 128>}, {transform_indices = @transform_2, window_bounds = array<i64: 8, 1>}, {transform_indices = @transform_3, window_bounds = array<i64: 1, 128>}, {transform_indices = @transform_4, window_bounds = array<i64: 8, 128>}]} {
    %c0_i32 = arith.constant 0 : i32
    %0 = arith.cmpi eq, %arg2, %c0_i32 : i32
    %1 = arith.extui %0 : i1 to i32
    %c0_i32_0 = arith.constant 0 : i32
    %2 = arith.cmpi ne, %1, %c0_i32_0 : i32
    scf.if %2 {
      %cst_10 = arith.constant 0.000000e+00 : f32
      %12 = vector.broadcast %cst_10 : f32 to vector<8x128xf32>
      %c0_11 = arith.constant 0 : index
      %c0_12 = arith.constant 0 : index
      %13 = vector.load %arg8[%c0_11, %c0_12] : memref<8x128xf32, #tpu.memory_space<vmem>>, vector<8x128xf32>
      tpu.vector_store %arg8[%c0_11, %c0_12], %12 {strides = array<i32>} : memref<8x128xf32, #tpu.memory_space<vmem>>, vector<8x128xf32>,
    } else {
    }
    %c0 = arith.constant 0 : index
    %c0_1 = arith.constant 0 : index
    %3 = vector.load %arg8[%c0, %c0_1] : memref<8x128xf32, #tpu.memory_space<vmem>>, vector<8x128xf32>
    %c0_2 = arith.constant 0 : index
    %c0_3 = arith.constant 0 : index
    %4 = vector.load %arg3[%c0_2, %c0_3] : memref<8x128xf32, #tpu.memory_space<vmem>>, vector<8x128xf32>
    %c0_4 = arith.constant 0 : index
    %c0_5 = arith.constant 0 : index
    %5 = vector.load %arg4[%c0_4, %c0_5] : memref<128x128xf32, #tpu.memory_space<vmem>>, vector<128x128xf32>
    %cst = arith.constant dense<0.000000e+00> : vector<8x128xf32>
    %6 = tpu.matmul %4, %5, %cst {dimension_numbers = #tpu.dot_dimension_numbers<[1], [1], [0], [0], [0, 0, 1, 0], [], []>} : vector<8x128xf32>, vector<128x128xf32>, vector<8x128xf32> -> vector<8x128xf32>
    %7 = arith.addf %3, %6 : vector<8x128xf32>
    %c0_6 = arith.constant 0 : index
    %c0_7 = arith.constant 0 : index
    %8 = vector.load %arg8[%c0_6, %c0_7] : memref<8x128xf32, #tpu.memory_space<vmem>>, vector<8x128xf32>
    tpu.vector_store %arg8[%c0_6, %c0_7], %7 {strides = array<i32>} : memref<8x128xf32, #tpu.memory_space<vmem>>, vector<8x128xf32>,
    %c0_i32_8 = arith.constant 0 : i32
    %9 = arith.cmpi eq, %arg2, %c0_i32_8 : i32
    %10 = arith.extui %9 : i1 to i32
    %c0_i32_9 = arith.constant 0 : i32
    %11 = arith.cmpi ne, %10, %c0_i32_9 : i32
    scf.if %11 {
      %c0_10 = arith.constant 0 : index
      %c0_11 = arith.constant 0 : index
      %12 = vector.load %arg8[%c0_10, %c0_11] : memref<8x128xf32, #tpu.memory_space<vmem>>, vector<8x128xf32>
      %c0_12 = arith.constant 0 : index
      %c0_13 = arith.constant 0 : index
      %13 = vector.load %arg5[%c0_12, %c0_13] : memref<8x1xf32, #tpu.memory_space<vmem>>, vector<8x1xf32>
      %14 = vector.broadcast %13 : vector<8x1xf32> to vector<8x128xf32>
      %15 = arith.mulf %12, %14 : vector<8x128xf32>
      %c0_14 = arith.constant 0 : index
      %c0_15 = arith.constant 0 : index
      %16 = vector.load %arg6[%c0_14, %c0_15] : memref<1x128xf32, #tpu.memory_space<vmem>>, vector<1x128xf32>
      %17 = vector.broadcast %16 : vector<1x128xf32> to vector<8x128xf32>
      %18 = arith.mulf %15, %17 : vector<8x128xf32>
      %c0_16 = arith.constant 0 : index
      %c0_17 = arith.constant 0 : index
      %19 = vector.load %arg7[%c0_16, %c0_17] : memref<8x128xf32, #tpu.memory_space<vmem>>, vector<8x128xf32>
      tpu.vector_store %arg7[%c0_16, %c0_17], %18 {strides = array<i32>} : memref<8x128xf32, #tpu.memory_space<vmem>>, vector<8x128xf32>,
    } else {
    }
    return
  }
  func.func @transform_0(%arg0: i32, %arg1: i32, %arg2: i32) -> (i32, i32) {
    %c0_i32 = arith.constant 0 : i32
    return %arg0, %arg2 : i32, i32
  }
  func.func @transform_1(%arg0: i32, %arg1: i32, %arg2: i32) -> (i32, i32) {
    %c0_i32 = arith.constant 0 : i32
    return %arg1, %arg2 : i32, i32
  }
  func.func @transform_2(%arg0: i32, %arg1: i32, %arg2: i32) -> (i32, i32) {
    %c0_i32 = arith.constant 0 : i32
    %c0_i32_0 = arith.constant 0 : i32
    return %arg0, %c0_i32 : i32, i32
  }
  func.func @transform_3(%arg0: i32, %arg1: i32, %arg2: i32) -> (i32, i32) {
    %c0_i32 = arith.constant 0 : i32
    %c0_i32_0 = arith.constant 0 : i32
    return %c0_i32, %arg1 : i32, i32
  }
  func.func @transform_4(%arg0: i32, %arg1: i32, %arg2: i32) -> (i32, i32) {
    %c0_i32 = arith.constant 0 : i32
    return %arg0, %arg1 : i32, i32
  }
}

</mosaic_0001>

<llo_original>
// kernel: cosine_linear.1
$region0: #{cosine_linear.1}
  #allocation0 [shape = 'u32[]', space=smem, size = 0x4, offset = 0x4, fixed_abs, tag = 'smem constant byte address 0x4 - core index']
  #allocation1 [shape = 'u32[144,128]{1,0:T(1,128)}', space=vmem, size = 0x12000, scoped, tag = 'internal scratch']
  #allocation2 [shape = 'f32[8,128]{1,0:T(8,128)}', space=vmem, size = 0x1000, scoped, tag = 'scratch operand']
  %s0 = inlined_call_operand.vmem [shape: f32[8,128], index: 0, kind: input, shape index: {}]
  %s1 = inlined_call_operand.vmem [shape: f32[128,128], index: 1, kind: input, shape index: {}]
  %s2 = inlined_call_operand.vmem [shape: f32[8,1], index: 2, kind: input, shape index: {}]
  %s3 = inlined_call_operand.vmem [shape: f32[1,128], index: 3, kind: input, shape index: {}]
  %s4 = inlined_call_operand.hbm [shape: f32[8,128], index: 4, kind: output, shape index: {}]
  %s5 = sld [smem:[#allocation0]]
  $region34: #{cosine_linear.1} parent=0
    _
  %s7 = ssub.s32 1, %s5
  %s8 = scalar_select 0, %s7, %s5
  $region1: #{cosine_linear.1} parent=0
    #allocation3 [shape = 'u8[4096]{0}', space=vmem, size = 0x1000, scoped, tag = 'output window, operand 0, single buffered']
    #allocation4 [shape = 's32[1]{0}', space=sflag, size = 0x4, scoped, tag = 'scoped memory for cosine_linear.1']
    %9 = vsyncpa [#allocation4], 0
    // Predicated region
    $region2: #{cosine_linear.1} parent=1 // pred_check
      _
    $region3: #{cosine_linear.1} parent=1 // pred_check_branch
      %11 = sbr.rel (0) target = $region5
    $region4: #{cosine_linear.1} parent=1 // pred_region
      _
    $region5: #{cosine_linear.1} parent=1 // pred_fallthru
      _
    // Predicated region
    $region6: #{cosine_linear.1} parent=1 // pred_check
      _
    $region7: #{cosine_linear.1} parent=1 // pred_check_branch
      %13 = sbr.rel (0) target = $region9
    $region8: #{cosine_linear.1} parent=1 // pred_region
      _
    $region9: #{cosine_linear.1} parent=1 // pred_fallthru
      _
    // Predicated region
    $region10: #{cosine_linear.1} parent=1 // pred_check
      _
    $region11: #{cosine_linear.1} parent=1 // pred_check_branch
      %15 = sbr.rel (0) target = $region13
    $region12: #{cosine_linear.1} parent=1 // pred_region
      _
    $region13: #{cosine_linear.1} parent=1 // pred_fallthru
      _
    // Predicated region
    $region14: #{cosine_linear.1} parent=1 // pred_check
      _
    $region15: #{cosine_linear.1} parent=1 // pred_check_branch
      %17 = sbr.rel (0) target = $region17
    $region16: #{cosine_linear.1} parent=1 // pred_region
      _
    $region17: #{cosine_linear.1} parent=1 // pred_fallthru
      _
    %p18 = scmp.eq.s32.totalorder 0, 0
    // Predicated region
    $region18: #{cosine_linear.1} parent=1 // pred_check
      %p19 = pneg %p18
    $region19: #{cosine_linear.1} parent=1 // pred_check_branch
      %21 = sbr.rel (%p19) target = $region21
    $region20: #{cosine_linear.1} parent=1 // pred_region
      %22 = vst [vmem:[#allocation2] sm:$0xff] 0.0
    $region21: #{cosine_linear.1} parent=1 // pred_fallthru
      _
    %v23 = vld [vmem:[#allocation2] sm:$0xff]
    %v24 = vld [vmem:[%s0] sm:$0xff]
    %v25 = vld [vmem:[%s1] sm:$0xff]
    %v26 = vld [vmem:[%s1 + $0x8] sm:$0xff]
    %v27 = vld [vmem:[%s1 + $0x10] sm:$0xff]
    %v28 = vld [vmem:[%s1 + $0x18] sm:$0xff]
    %v29 = vld [vmem:[%s1 + $0x20] sm:$0xff]
    %v30 = vld [vmem:[%s1 + $0x28] sm:$0xff]
    %v31 = vld [vmem:[%s1 + $0x30] sm:$0xff]
    %v32 = vld [vmem:[%s1 + $0x38] sm:$0xff]
    %v33 = vld [vmem:[%s1 + $0x40] sm:$0xff]
    %v34 = vld [vmem:[%s1 + $0x48] sm:$0xff]
    %v35 = vld [vmem:[%s1 + $0x50] sm:$0xff]
    %v36 = vld [vmem:[%s1 + $0x58] sm:$0xff]
    %v37 = vld [vmem:[%s1 + $0x60] sm:$0xff]
    %v38 = vld [vmem:[%s1 + $0x68] sm:$0xff]
    %v39 = vld [vmem:[%s1 + $0x70] sm:$0xff]
    %v40 = vld [vmem:[%s1 + $0x78] sm:$0xff]
    %41 = vmatprep.subr.mxu0 0.0
    %42 = vmatpush1.xpose.msra.mxu0 %v25
    %43 = vmatprep.subr.mxu0 0.0
    %44 = vmatpush1.xpose.msra.mxu0 %v26
    %45 = vmatprep.subr.mxu0 0.0
    %46 = vmatpush1.xpose.msra.mxu0 %v27
    %47 = vmatprep.subr.mxu0 0.0
    %48 = vmatpush1.xpose.msra.mxu0 %v28
    %49 = vmatprep.subr.mxu0 0.0
    %50 = vmatpush1.xpose.msra.mxu0 %v29
    %51 = vmatprep.subr.mxu0 0.0
    %52 = vmatpush1.xpose.msra.mxu0 %v30
    %53 = vmatprep.subr.mxu0 0.0
    %54 = vmatpush1.xpose.msra.mxu0 %v31
    %55 = vmatprep.subr.mxu0 0.0
    %56 = vmatpush1.xpose.msra.mxu0 %v32
    %57 = vmatprep.subr.mxu0 0.0
    %58 = vmatpush1.xpose.msra.mxu0 %v33
    %59 = vmatprep.subr.mxu0 0.0
    %60 = vmatpush1.xpose.msra.mxu0 %v34
    %61 = vmatprep.subr.mxu0 0.0
    %62 = vmatpush1.xpose.msra.mxu0 %v35
    %63 = vmatprep.subr.mxu0 0.0
    %64 = vmatpush1.xpose.msra.mxu0 %v36
    %65 = vmatprep.subr.mxu0 0.0
    %66 = vmatpush1.xpose.msra.mxu0 %v37
    %67 = vmatprep.subr.mxu0 0.0
    %68 = vmatpush1.xpose.msra.mxu0 %v38
    %69 = vmatprep.subr.mxu0 0.0
    %70 = vmatpush1.xpose.msra.mxu0 %v39
    %71 = vmatprep.subr.mxu0 0.0
    %72 = vmatpush1.xpose.msra.mxu0 %v40
    %73 = vmatprep.subr.mxu0 0.0
    %74 = vmatpush1.xpose.msra.mxu0 0.0
    %75 = vmatprep.subr.mxu0 0.0
    %76 = vmatpush1.xpose.msra.mxu0 0.0
    %77 = vmatprep.subr.mxu0 0.0
    %78 = vmatpush1.xpose.msra.mxu0 0.0
    %79 = vmatprep.subr.mxu0 0.0
    %80 = vmatpush1.xpose.msra.mxu0 0.0
    %81 = vmatprep.subr.mxu0 0.0
    %82 = vmatpush1.xpose.msra.mxu0 0.0
    %83 = vmatprep.subr.mxu0 0.0
    %84 = vmatpush1.xpose.msra.mxu0 0.0
    %85 = vmatprep.subr.mxu0 0.0
    %86 = vmatpush1.xpose.msra.mxu0 0.0
    %87 = vmatprep.subr.mxu0 0.0
    %88 = vmatpush1.xpose.msra.mxu0 0.0
    %89 = vmatprep.subr.mxu0 0.0
    %90 = vmatpush1.xpose.msra.mxu0 0.0
    %91 = vmatprep.subr.mxu0 0.0
    %92 = vmatpush1.xpose.msra.mxu0 0.0
    %93 = vmatprep.subr.mxu0 0.0
    %94 = vmatpush1.xpose.msra.mxu0 0.0
    %95 = vmatprep.subr.mxu0 0.0
    %96 = vmatpush1.xpose.msra.mxu0 0.0
    %97 = vmatprep.subr.mxu0 0.0
    %98 = vmatpush1.xpose.msra.mxu0 0.0
    %99 = vmatprep.subr.mxu0 0.0
    %100 = vmatpush1.xpose.msra.mxu0 0.0
    %101 = vmatprep.subr.mxu0 0.0
    %102 = vmatpush1.xpose.msra.mxu0 0.0
    %103 = vmatprep.subr.mxu0 0.0
    %104 = vmatpush1.xpose.msra.mxu0 0.0
    %105 = vmatprep.mubr.f32.mxu0 0.0
    %106 = vmatmul.mubr.f32.gmra.mrb[0].mxu0 %v24
    %v107 = vpop.f32.mrb[0].mxu0
    %v108 = vadd.f32 0.0, %v107
    %v109 = vpop.f32.mrb[0].mxu0
    %110 = vdwg.mxu0
    %v111 = vadd.f32 %v23, %v108
    %112 = vst [vmem:[#allocation2] sm:$0xff] %v111
    // Predicated region
    $region22: #{cosine_linear.1} parent=1 // pred_check
      %p113 = pneg %p18
    $region23: #{cosine_linear.1} parent=1 // pred_check_branch
      %115 = sbr.rel (%p113) target = $region25
    $region24: #{cosine_linear.1} parent=1 // pred_region
      %v116 = vld [vmem:[#allocation2] sm:$0xff]
      %v117 = vld [vmem:[%s2] sm:$0xff]
      %119 = vset.pattern.permute.xlu0 0
      %120 = vperm.xlu0 %119, %v117
      %v121 = vpop.permute.xlu0 %120
      %v123 = vmul.f32 %v116, %v121
      %v124 = vld [vmem:[%s3] sm:$0x1]
      %v126 = vlaneseq
      %v127 = vshrl.u32 %v126, 7
      %v128 = vsub.s32 0, %v127
      %v129 = vrot.slane %v124, %v128
      %v131 = vmul.f32 %v123, %v129
      %132 = vst [vmem:[#allocation3] sm:$0xff] %v131
    $region25: #{cosine_linear.1} parent=1 // pred_fallthru
      _
    // Predicated region
    $region26: #{cosine_linear.1} parent=1 // pred_check
      _
    $region27: #{cosine_linear.1} parent=1 // pred_check_branch
      %134 = sbr.rel (0) target = $region29
    $region28: #{cosine_linear.1} parent=1 // pred_region
      %s136 = ssub.s32 128, 128
      %137 = vsyncadd [#allocation4], %s136
      %s139 = sshll.u32 [#allocation3], 4
      %s140 = int_to_ptr.vmem [resolvable:$true] %s139
      %142 = dma.vmem_to_hbm [thread:$0]  %s140, 128, %s4, [#allocation4]
    $region29: #{cosine_linear.1} parent=1 // pred_fallthru
      _
    // Predicated region
    $region30: #{cosine_linear.1} parent=1 // pred_check
      _
    $region31: #{cosine_linear.1} parent=1 // pred_check_branch
      %144 = sbr.rel (0) target = $region33
    $region32: #{cosine_linear.1} parent=1 // pred_region
      %145 = dma.done [#allocation4], 128
    $region33: #{cosine_linear.1} parent=1 // pred_fallthru
      _
    %146 = vsyncpa [#allocation4], 1

</llo_original>
